<compile_context>
chip_gen: v7x
topology: tpu7x:2x2x1
jax: 0.10.0
libtpu: 0.0.40
codegen_flags: <defaults>
</compile_context>

<pallas_src>
import functools

import jax
import jax.numpy as jnp
from jax.experimental import pallas as pl
from jax.experimental.pallas import tpu as pltpu


def _attention_kernel(x_ref, wf_ref, bf_ref, va_ref, ctx_ref, attn_ref, *,
                      flatten):
    tb, s, h = x_ref.shape
    x = x_ref[...]                                              # (TB, S, H)

    # 1) Fused hidden projection: one (TB*S, H) x (H, H) MXU matmul when the
    #    flatten is a free sublane collapse (S % 8 == 0), else batched einsum.
    #    bf16 MXU operands, f32 accumulation; bias-add + tanh in f32.
    if flatten:
        xm = x.reshape(tb * s, h).astype(wf_ref.dtype)
        proj = jnp.dot(xm, wf_ref[...], preferred_element_type=jnp.float32)
        proj = (proj + bf_ref[...]).reshape(tb, s, h)
    else:
        proj = jnp.einsum('bsh,hk->bsk', x.astype(wf_ref.dtype), wf_ref[...],
                          preferred_element_type=jnp.float32) + bf_ref[...]
    hid = jnp.tanh(proj)                                        # (TB, S, H) f32

    # 2) Va projection as VPU multiply + XLU lane reduce (no M=1 MXU matmuls).
    #    The Va bias is dropped: softmax is shift-invariant.
    va = va_ref[...].reshape(1, 1, h)                           # (1, 1, H) f32
    scores = jnp.sum(hid * va, axis=-1)                         # (TB, S) f32

    # 3) Softmax over the sequence axis (lanes). Exact normalization so the
    #    returned weights sum to 1.
    m = jnp.max(scores, axis=-1, keepdims=True)                 # (TB, 1)
    e = jnp.exp(scores - m)                                     # (TB, S)
    w = e / jnp.sum(e, axis=-1, keepdims=True)                  # (TB, S) f32

    # 4) context = sum_s attn[b,s] * x[b,s,:]  — VPU multiply + sublane reduce.
    xf = x.astype(jnp.float32)
    ctx = jnp.sum(w[:, :, None] * xf, axis=1)                   # (TB, H) f32

    ctx_ref[...] = ctx.astype(ctx_ref.dtype)
    attn_ref[...] = w.astype(attn_ref.dtype)


def _vmem_capacity_bytes():
    """Per-core VMEM capacity; conservative 64 MiB fallback (v7x per-TC)."""
    try:
        info = pltpu.get_tpu_info()
        cap = getattr(info, "vmem_capacity_bytes", None)
        if cap:
            return int(cap)
    except Exception:
        pass
    return 64 * 1024 * 1024


def _pick_batch_tile(B, S, H, x_itemsize, vmem_budget_bytes):
    """Largest batch tile that fits the VMEM budget.

    TB is either the full batch (B <= 8) or a multiple of 8 (so the sublane
    dim of the 2-D output blocks is legal), capped so grid = cdiv(B, TB) >= 2
    (keeps both v7x TensorCores busy via dimension_semantics=('parallel',)).
    """
    def fits(tb):
        x_bytes = 2 * tb * S * H * x_itemsize        # double-buffered x tile
        mid_bytes = 2 * tb * S * H * 4               # f32 hid + ctx-product
        out_bytes = 2 * tb * (H + S) * 4             # double-buffered outputs
        w_bytes = 2 * (H * H * 2 + 2 * H * 4)        # fused W (bf16) + biases
        return x_bytes + mid_bytes + out_bytes + w_bytes <= vmem_budget_bytes

    if B <= 8:
        return B                                     # single full-extent block

    half = -(-B // 2)                                # ceil(B / 2)
    cap = min(((half + 7) // 8) * 8, ((B - 1) // 8) * 8)
    cap = max(cap, 8)

    tb = 8                                           # minimum legal sublane tile
    cand = 8
    while cand <= cap and fits(cand):
        tb = cand
        cand += 8
    return tb


def attention_forward(lstm_out, wa_t, ua_t, va_t, ba, bu, bv=None,
                      *, mm_dtype=jnp.bfloat16):
    """Additive attention forward pass.

    lstm_out: (B, S, H); wa_t/ua_t: (H, H) (== torch weight.T); va_t: (H, 1);
    ba/bu: (1, H); bv: unused (softmax shift-invariance makes it a no-op).
    Returns (context (B, H), attention_weights (B, S, 1) in f32).
    """
    del bv  # provably a no-op after the softmax
    B, S, H = lstm_out.shape
    out_dtype = lstm_out.dtype

    # Algebraic fusion: Wa(x) + Ua(x) == x @ (Wa^T + Ua^T) + (ba + bu).
    w_fused = (wa_t + ua_t).astype(mm_dtype)                    # (H, H)
    b_fused = (ba + bu).astype(jnp.float32).reshape(1, H)       # (1, H)
    va_row = va_t.reshape(1, H).astype(jnp.float32)             # (1, H)

    vmem_cap = _vmem_capacity_bytes()
    picker_budget = max(32 << 20, int(vmem_cap * 0.70))
    vmem_limit = min(vmem_cap, max(picker_budget + (8 << 20),
                                   int(vmem_cap * 0.80)))

    TB = _pick_batch_tile(B, S, H, lstm_out.dtype.itemsize, picker_budget)
    grid = (pl.cdiv(B, TB),)
    flatten = (S % 8 == 0)

    kernel = functools.partial(_attention_kernel, flatten=flatten)

    ctx, attn = pl.pallas_call(
        kernel,
        out_shape=(
            jax.ShapeDtypeStruct((B, H), out_dtype),            # context
            jax.ShapeDtypeStruct((B, S), jnp.float32),          # attn weights
        ),
        grid_spec=pltpu.PrefetchScalarGridSpec(
            num_scalar_prefetch=0,
            grid=grid,
            in_specs=[
                pl.BlockSpec((TB, S, H), lambda b: (b, 0, 0)),  # lstm_out
                pl.BlockSpec((H, H), lambda b: (0, 0)),         # fused W
                pl.BlockSpec((1, H), lambda b: (0, 0)),         # fused bias
                pl.BlockSpec((1, H), lambda b: (0, 0)),         # Va row
            ],
            out_specs=[
                pl.BlockSpec((TB, H), lambda b: (b, 0)),
                pl.BlockSpec((TB, S), lambda b: (b, 0)),
            ],
        ),
        compiler_params=pltpu.CompilerParams(
            dimension_semantics=("parallel",),
            vmem_limit_bytes=vmem_limit,
        ),
    )(lstm_out, w_fused, b_fused, va_row)

    context = ctx                                   # (B, H)
    attention_weights = attn[:, :, None]            # (B, S, 1), f32
    return context, attention_weights


def _kaiming_uniform(key, shape, fan_in):
    # nn.init.kaiming_uniform_ (a=0): bound = sqrt(2) * sqrt(3 / fan_in)
    bound = jnp.sqrt(2.0) * jnp.sqrt(3.0 / fan_in)
    return jax.random.uniform(key, shape, jnp.float32, -bound, bound)


if __name__ == "__main__":
    B, S, H = 2, 8, 32
    key = jax.random.PRNGKey(0)
    k_x, k_wa, k_ua, k_va = jax.random.split(key, 4)

    lstm_out = jax.random.normal(k_x, (B, S, H), jnp.float32)

    # Parameters (kaiming-uniform weights, zero biases) — stored transposed.
    wa_t = _kaiming_uniform(k_wa, (H, H), fan_in=H)     # Wa.weight.T
    ua_t = _kaiming_uniform(k_ua, (H, H), fan_in=H)     # Ua.weight.T
    va_t = _kaiming_uniform(k_va, (H, 1), fan_in=H)     # Va.weight.T
    ba = jnp.zeros((1, H), jnp.float32)
    bu = jnp.zeros((1, H), jnp.float32)
    bv = jnp.zeros((1, 1), jnp.float32)

    context, attn = attention_forward(lstm_out, wa_t, ua_t, va_t, ba, bu, bv)
    jax.block_until_ready((context, attn))

    assert context.shape == (B, H)
    assert attn.shape == (B, S, 1)

    # (1) Precision-matched reference (bf16 hidden matmul, f32 elsewhere).
    xb = lstm_out.astype(jnp.bfloat16)
    wfb = (wa_t + ua_t).astype(jnp.bfloat16)
    hid_m = jnp.tanh(jnp.einsum('bsh,hk->bsk', xb, wfb,
                                preferred_element_type=jnp.float32) + (ba + bu))
    scores_m = jnp.sum(hid_m * va_t.reshape(1, 1, H), axis=-1, keepdims=True)
    attn_m = jax.nn.softmax(scores_m, axis=1)
    ctx_m = jnp.sum(attn_m * lstm_out, axis=1)
    assert jnp.allclose(context, ctx_m, atol=1e-2, rtol=1e-2)
    assert jnp.allclose(attn, attn_m, atol=1e-2, rtol=1e-2)

    # (2) Full-f32 module reference (loose tolerance due to bf16 MXU inputs).
    hid_f = jnp.tanh(lstm_out @ wa_t + ba + lstm_out @ ua_t + bu)
    scores_f = hid_f @ va_t + bv
    attn_f = jax.nn.softmax(scores_f, axis=1)
    ctx_f = jnp.einsum('bsz,bsh->bzh', attn_f, lstm_out)[:, 0, :]
    assert jnp.allclose(context, ctx_f, atol=5e-2, rtol=5e-2)
    assert jnp.allclose(attn, attn_f, atol=5e-2, rtol=5e-2)

    print("KERNEL_OK")
</pallas_src>

<mosaic_0001>
module attributes {stable_mosaic.version = 11 : i64} {
  func.func @_attention_kernel(%arg0: i32, %arg1: memref<2x8x32xf32, #tpu.memory_space<vmem>>, %arg2: memref<32x32xbf16, #tpu.memory_space<vmem>>, %arg3: memref<1x32xf32, #tpu.memory_space<vmem>>, %arg4: memref<1x32xf32, #tpu.memory_space<vmem>>, %arg5: memref<2x32xf32, #tpu.memory_space<vmem>>, %arg6: memref<2x8xf32, #tpu.memory_space<vmem>>) attributes {dimension_semantics = [#tpu.dimension_semantics<parallel>], iteration_bounds = array<i64: 1>, scalar_prefetch = 0 : i64, scratch_operands = 0 : i64, tpu.core_type = #tpu.core_type<tc>, window_params = [{transform_indices = @transform_0, window_bounds = array<i64: 2, 8, 32>}, {pipeline_mode = #tpu.pipeline_mode<synchronous>, transform_indices = @transform_1, window_bounds = array<i64: 32, 32>}, {pipeline_mode = #tpu.pipeline_mode<synchronous>, transform_indices = @transform_2, window_bounds = array<i64: 1, 32>}, {pipeline_mode = #tpu.pipeline_mode<synchronous>, transform_indices = @transform_3, window_bounds = array<i64: 1, 32>}, {transform_indices = @transform_4, window_bounds = array<i64: 2, 32>}, {transform_indices = @transform_5, window_bounds = array<i64: 2, 8>}]} {
    %c0 = arith.constant 0 : index
    %c0_0 = arith.constant 0 : index
    %c0_1 = arith.constant 0 : index
    %0 = vector.load %arg1[%c0, %c0_0, %c0_1] : memref<2x8x32xf32, #tpu.memory_space<vmem>>, vector<2x8x32xf32>
    %1 = vector.shape_cast %0 : vector<2x8x32xf32> to vector<16x32xf32>
    %2 = arith.truncf %1 : vector<16x32xf32> to vector<16x32xbf16>
    %c0_2 = arith.constant 0 : index
    %c0_3 = arith.constant 0 : index
    %3 = vector.load %arg2[%c0_2, %c0_3] : memref<32x32xbf16, #tpu.memory_space<vmem>>, vector<32x32xbf16>
    %cst = arith.constant dense<0.000000e+00> : vector<16x32xf32>
    %4 = tpu.matmul %2, %3, %cst {dimension_numbers = #tpu.dot_dimension_numbers<[1], [0], [0], [1], [0, 0, 1, 1], [], []>} : vector<16x32xbf16>, vector<32x32xbf16>, vector<16x32xf32> -> vector<16x32xf32>
    %c0_4 = arith.constant 0 : index
    %c0_5 = arith.constant 0 : index
    %5 = vector.load %arg3[%c0_4, %c0_5] : memref<1x32xf32, #tpu.memory_space<vmem>>, vector<1x32xf32>
    %6 = vector.broadcast %5 : vector<1x32xf32> to vector<16x32xf32>
    %7 = arith.addf %4, %6 : vector<16x32xf32>
    %8 = vector.shape_cast %7 : vector<16x32xf32> to vector<2x8x32xf32>
    %9 = math.tanh %8 : vector<2x8x32xf32>
    %c0_6 = arith.constant 0 : index
    %c0_7 = arith.constant 0 : index
    %10 = vector.load %arg4[%c0_6, %c0_7] : memref<1x32xf32, #tpu.memory_space<vmem>>, vector<1x32xf32>
    %11 = vector.shape_cast %10 : vector<1x32xf32> to vector<1x1x32xf32>
    %12 = vector.broadcast %11 : vector<1x1x32xf32> to vector<2x8x32xf32>
    %13 = arith.mulf %9, %12 : vector<2x8x32xf32>
    %cst_8 = arith.constant dense<0.000000e+00> : vector<2x8xf32>
    %14 = vector.multi_reduction <add>, %13, %cst_8 [2] : vector<2x8x32xf32> to vector<2x8xf32>
    %cst_9 = arith.constant dense<0xFF800000> : vector<2xf32>
    %15 = vector.multi_reduction <maximumf>, %14, %cst_9 [1] : vector<2x8xf32> to vector<2xf32>
    %16 = vector.shape_cast %15 : vector<2xf32> to vector<2x1xf32>
    %17 = vector.broadcast %16 : vector<2x1xf32> to vector<2x8xf32>
    %18 = arith.subf %14, %17 : vector<2x8xf32>
    %19 = math.exp %18 : vector<2x8xf32>
    %cst_10 = arith.constant dense<0.000000e+00> : vector<2xf32>
    %20 = vector.multi_reduction <add>, %19, %cst_10 [1] : vector<2x8xf32> to vector<2xf32>
    %21 = vector.shape_cast %20 : vector<2xf32> to vector<2x1xf32>
    %22 = vector.broadcast %21 : vector<2x1xf32> to vector<2x8xf32>
    %23 = arith.divf %19, %22 : vector<2x8xf32>
    %24 = vector.shape_cast %23 : vector<2x8xf32> to vector<2x8x1xf32>
    %25 = vector.broadcast %24 : vector<2x8x1xf32> to vector<2x8x32xf32>
    %26 = arith.mulf %25, %0 : vector<2x8x32xf32>
    %cst_11 = arith.constant dense<0.000000e+00> : vector<2x32xf32>
    %27 = vector.multi_reduction <add>, %26, %cst_11 [1] : vector<2x8x32xf32> to vector<2x32xf32>
    %c0_12 = arith.constant 0 : index
    %c0_13 = arith.constant 0 : index
    %28 = vector.load %arg5[%c0_12, %c0_13] : memref<2x32xf32, #tpu.memory_space<vmem>>, vector<2x32xf32>
    tpu.vector_store %arg5[%c0_12, %c0_13], %27 {strides = array<i32>} : memref<2x32xf32, #tpu.memory_space<vmem>>, vector<2x32xf32>,
    %c0_14 = arith.constant 0 : index
    %c0_15 = arith.constant 0 : index
    %29 = vector.load %arg6[%c0_14, %c0_15] : memref<2x8xf32, #tpu.memory_space<vmem>>, vector<2x8xf32>
    tpu.vector_store %arg6[%c0_14, %c0_15], %23 {strides = array<i32>} : memref<2x8xf32, #tpu.memory_space<vmem>>, vector<2x8xf32>,
    return
  }
  func.func @transform_0(%arg0: i32) -> (i32, i32, i32) {
    %c0_i32 = arith.constant 0 : i32
    %c0_i32_0 = arith.constant 0 : i32
    %c0_i32_1 = arith.constant 0 : i32
    return %arg0, %c0_i32, %c0_i32_0 : i32, i32, i32
  }
  func.func @transform_1(%arg0: i32) -> (i32, i32) {
    %c0_i32 = arith.constant 0 : i32
    %c0_i32_0 = arith.constant 0 : i32
    %c0_i32_1 = arith.constant 0 : i32
    return %c0_i32, %c0_i32_0 : i32, i32
  }
  func.func @transform_2(%arg0: i32) -> (i32, i32) {
    %c0_i32 = arith.constant 0 : i32
    %c0_i32_0 = arith.constant 0 : i32
    %c0_i32_1 = arith.constant 0 : i32
    return %c0_i32, %c0_i32_0 : i32, i32
  }
  func.func @transform_3(%arg0: i32) -> (i32, i32) {
    %c0_i32 = arith.constant 0 : i32
    %c0_i32_0 = arith.constant 0 : i32
    %c0_i32_1 = arith.constant 0 : i32
    return %c0_i32, %c0_i32_0 : i32, i32
  }
  func.func @transform_4(%arg0: i32) -> (i32, i32) {
    %c0_i32 = arith.constant 0 : i32
    %c0_i32_0 = arith.constant 0 : i32
    return %arg0, %c0_i32 : i32, i32
  }
  func.func @transform_5(%arg0: i32) -> (i32, i32) {
    %c0_i32 = arith.constant 0 : i32
    %c0_i32_0 = arith.constant 0 : i32
    return %arg0, %c0_i32 : i32, i32
  }
}

</mosaic_0001>

<llo_original>
// kernel: tpu_custom_call.1
$region0: #{tpu_custom_call.1}
  #allocation0 [shape = 'u32[]', space=smem, size = 0x4, offset = 0x4, fixed_abs, tag = 'smem constant byte address 0x4 - core index']
  #allocation1 [shape = 'u32[144,128]{1,0:T(1,128)}', space=vmem, size = 0x12000, scoped, tag = 'internal scratch']
  %s0 = inlined_call_operand.hbm [shape: f32[2,8,32], index: 0, kind: input, shape index: {}]
  %s1 = inlined_call_operand.hbm [shape: bf16[32,32], index: 1, kind: input, shape index: {}]
  %s2 = inlined_call_operand.vmem [shape: f32[1,32], index: 2, kind: input, shape index: {}]
  %s3 = inlined_call_operand.vmem [shape: f32[1,32], index: 3, kind: input, shape index: {}]
  %s4 = inlined_call_operand.hbm [shape: f32[2,32], index: 4, kind: output, shape index: {0}]
  %s5 = inlined_call_operand.hbm [shape: f32[2,8], index: 5, kind: output, shape index: {1}]
  %6 = xla_tuple %s4, %s5
  %s7 = sld [smem:[#allocation0]]
  $region42: #{tpu_custom_call.1} parent=0
    _
  %s9 = ssub.s32 1, %s7
  %s10 = scalar_select 0, %s9, %s7
  $region1: #{tpu_custom_call.1} parent=0
    #allocation2 [shape = 'u8[8192]{0}', space=vmem, size = 0x2000, scoped, tag = 'input window, operand 0, single buffered']
    #allocation3 [shape = 's32[1]{0}', space=sflag, size = 0x4, scoped, tag = 'scoped memory for tpu_custom_call.1']
    #allocation4 [shape = 's32[1]{0}', space=sflag, size = 0x4, scoped, tag = 'scoped memory for tpu_custom_call.1']
    #allocation5 [shape = 'u8[8192]{0}', space=vmem, size = 0x2000, scoped, tag = 'input window, operand 1, single buffered']
    #allocation6 [shape = 's32[1]{0}', space=sflag, size = 0x4, scoped, tag = 'scoped memory for tpu_custom_call.1']
    #allocation7 [shape = 'u8[1024]{0}', space=vmem, size = 0x400, scoped, tag = 'output window, operand 0, single buffered']
    #allocation8 [shape = 'u8[1024]{0}', space=vmem, size = 0x400, scoped, tag = 'output window, operand 1, single buffered']
    #allocation9 [shape = 's32[1]{0}', space=sflag, size = 0x4, scoped, tag = 'scoped memory for tpu_custom_call.1']
    %11 = vsyncpa [#allocation3], 0
    %12 = vsyncpa [#allocation6], 0
    %13 = vsyncpa [#allocation4], 0
    %14 = vsyncpa [#allocation9], 0
    // Predicated region
    $region2: #{tpu_custom_call.1} parent=1 // pred_check
      _
    $region3: #{tpu_custom_call.1} parent=1 // pred_check_branch
      %16 = sbr.rel (0) target = $region5
    $region4: #{tpu_custom_call.1} parent=1 // pred_region
      %s18 = ssub.s32 256, 256
      %19 = vsyncadd [#allocation3], %s18
      %s20 = sshll.u32 [#allocation2], 4
      %s21 = int_to_ptr.vmem [resolvable:$true] %s20
      %26 = dma.hbm_to_vmem [thread:$0]  %s0, 256, %s21, [#allocation3], 128, 128, 8
    $region5: #{tpu_custom_call.1} parent=1 // pred_fallthru
      _
    // Predicated region
    $region6: #{tpu_custom_call.1} parent=1 // pred_check
      _
    $region7: #{tpu_custom_call.1} parent=1 // pred_check_branch
      %28 = sbr.rel (0) target = $region9
    $region8: #{tpu_custom_call.1} parent=1 // pred_region
      %s30 = ssub.s32 256, 256
      %31 = vsyncadd [#allocation6], %s30
      %s32 = sshll.u32 [#allocation5], 4
      %s33 = int_to_ptr.vmem [resolvable:$true] %s32
      %38 = dma.hbm_to_vmem [thread:$0]  %s1, 256, %s33, [#allocation6], 64, 64, 4
    $region9: #{tpu_custom_call.1} parent=1 // pred_fallthru
      _
    // Predicated region
    $region10: #{tpu_custom_call.1} parent=1 // pred_check
      _
    $region11: #{tpu_custom_call.1} parent=1 // pred_check_branch
      %40 = sbr.rel (0) target = $region13
    $region12: #{tpu_custom_call.1} parent=1 // pred_region
      _
    $region13: #{tpu_custom_call.1} parent=1 // pred_fallthru
      _
    // Predicated region
    $region14: #{tpu_custom_call.1} parent=1 // pred_check
      _
    $region15: #{tpu_custom_call.1} parent=1 // pred_check_branch
      %42 = sbr.rel (0) target = $region17
    $region16: #{tpu_custom_call.1} parent=1 // pred_region
      _
    $region17: #{tpu_custom_call.1} parent=1 // pred_fallthru
      _
    // Predicated region
    $region18: #{tpu_custom_call.1} parent=1 // pred_check
      _
    $region19: #{tpu_custom_call.1} parent=1 // pred_check_branch
      %44 = sbr.rel (0) target = $region21
    $region20: #{tpu_custom_call.1} parent=1 // pred_region
      %45 = dma.done [#allocation3], 256
    $region21: #{tpu_custom_call.1} parent=1 // pred_fallthru
      _
    // Predicated region
    $region22: #{tpu_custom_call.1} parent=1 // pred_check
      _
    $region23: #{tpu_custom_call.1} parent=1 // pred_check_branch
      %47 = sbr.rel (0) target = $region25
    $region24: #{tpu_custom_call.1} parent=1 // pred_region
      %48 = dma.done [#allocation6], 256
    $region25: #{tpu_custom_call.1} parent=1 // pred_fallthru
      _
    %v50 = vld [vmem:[#allocation2] sm:$0xff]
    %v51 = vld [vmem:[#allocation2 + $0x8] sm:$0xff]
    %v52 = vpack.c.bf16 %v51, %v50
    %v53 = vld [vmem:[#allocation5] sm:$0xf]
    %v54 = vld [vmem:[#allocation5 + $0x4] sm:$0xf]
    %v55 = vld [vmem:[#allocation5 + $0x8] sm:$0xf]
    %v56 = vld [vmem:[#allocation5 + $0xc] sm:$0xf]
    %v57 = vld [vmem:[%s2] sm:$0x1]
    %v59 = vlaneseq
    %v60 = vshrl.u32 %v59, 7
    %v61 = vsub.s32 0, %v60
    %v62 = vrot.slane %v57, %v61
    %v68 = vunpack.c.l.b16 %v53
    %v69 = vunpack.c.l.b16 %v54
    %v70 = vunpack.c.l.b16 %v55
    %v71 = vunpack.c.l.b16 %v56
    %v72 = vpack.c.b16 %v69, %v68
    %v73 = vpack.c.b16 %v71, %v70
    %vm76 = vcmask 261120
    %v78 = vsel %vm76, %v52, 0
    %80 = vmatprep.subr.bf16.mxu0 0
    %81 = vmatpush1.bf16.msra.mxu0 %v72
    %82 = vmatprep.subr.bf16.mxu0 0
    %83 = vmatpush1.bf16.msra.mxu0 %v73
    %84 = vmatprep.subr.bf16.mxu0 0
    %85 = vmatpush1.bf16.msra.mxu0 0
    %86 = vmatprep.subr.bf16.mxu0 0
    %87 = vmatpush1.bf16.msra.mxu0 0
    %88 = vmatprep.subr.bf16.mxu0 0
    %89 = vmatpush1.bf16.msra.mxu0 0
    %90 = vmatprep.subr.bf16.mxu0 0
    %91 = vmatpush1.bf16.msra.mxu0 0
    %92 = vmatprep.subr.bf16.mxu0 0
    %93 = vmatpush1.bf16.msra.mxu0 0
    %94 = vmatprep.subr.bf16.mxu0 0
    %95 = vmatpush1.bf16.msra.mxu0 0
    %96 = vmatprep.subr.bf16.mxu0 0
    %97 = vmatpush1.bf16.msra.mxu0 0
    %98 = vmatprep.subr.bf16.mxu0 0
    %99 = vmatpush1.bf16.msra.mxu0 0
    %100 = vmatprep.subr.bf16.mxu0 0
    %101 = vmatpush1.bf16.msra.mxu0 0
    %102 = vmatprep.subr.bf16.mxu0 0
    %103 = vmatpush1.bf16.msra.mxu0 0
    %104 = vmatprep.subr.bf16.mxu0 0
    %105 = vmatpush1.bf16.msra.mxu0 0
    %106 = vmatprep.subr.bf16.mxu0 0
    %107 = vmatpush1.bf16.msra.mxu0 0
    %108 = vmatprep.subr.bf16.mxu0 0
    %109 = vmatpush1.bf16.msra.mxu0 0
    %110 = vmatprep.subr.bf16.mxu0 0
    %111 = vmatpush1.bf16.msra.mxu0 0
    %112 = vmatprep.mubr.bf16.mxu0 0
    %113 = vmatmul.mubr.bf16.gmra.mrb[0].mxu0 %v78
    %v114 = vpop.f32.mrb[0].mxu0
    %v115 = vadd.f32 %v62, %v114
    %v116 = vpop.f32.mrb[0].mxu0
    %v117 = vpop.f32.mrb[0].mxu0
    %v118 = vadd.f32 %v62, %v117
    %v119 = vpop.f32.mrb[0].mxu0
    %120 = vdwg.mxu0
    %v121 = vtanh.pop %v115
    %v122 = vtanh.pop %v118
    %v123 = vld [vmem:[%s3] sm:$0x1]
    %v125 = vlaneseq
    %v126 = vshrl.u32 %v125, 7
    %v127 = vsub.s32 0, %v126
    %v128 = vrot.slane %v123, %v127
    %v130 = vmul.f32 %v121, %v128
    %v131 = vmul.f32 %v122, %v128
    %v132 = vsel %vm76, %v130, 0.0
    %133 = vadd.xlane.f32.xlu0 %v132
    %v134 = vpop.xlane.xlu0 %133
    %v135 = vsel %vm76, %v131, 0.0
    %136 = vadd.xlane.f32.xlu0 %v135
    %v137 = vpop.xlane.xlu0 %136
    %v140 = vlaneseq
    %v141 = vand.u32 %v140, 127
    %v142 = vlaneseq
    %v143 = vshrl.u32 %v142, 7
    %v144 = vsub.s32 %v141, %v143
    %v145 = vrot.slane %v134, %v144
    %v146 = vlaneseq
    %v147 = vshrl.u32 %v146, 7
    %v148 = vsub.s32 %v141, %v147
    %v149 = vrot.slane %v137, %v148
    %vm150 = vcmask 1041409
    %v151 = vsel %vm150, %v149, %v145
    %vm153 = vcmask 58368
    %v154 = vsel %vm153, %v151, -inf
    %155 = vmax.xlane.f32.xlu0 %v154
    %v156 = vpop.xlane.xlu0 %155
    %v158 = vlaneseq
    %v159 = vshrl.u32 %v158, 7
    %v160 = vsub.s32 0, %v159
    %v161 = vrot.slane %v156, %v160
    %v162 = vlaneseq
    %v163 = vshrl.u32 %v162, 7
    %v164 = vsub.s32 1, %v163
    %v165 = vrot.slane %v156, %v164
    %v168 = vsub.f32 %v134, %v161
    %v169 = vsub.f32 %v137, %v165
    %v170 = vmul.f32 %v168, 1.442695
    %v171 = vpow.pop %v170
    %v172 = vmul.f32 %v169, 1.442695
    %v173 = vpow.pop %v172
    %176 = vset.pattern.permute.xlu0 0
    %177 = vperm.xlu0 %176, %v171
    %v178 = vpop.permute.xlu0 %177
    %179 = vset.pattern.permute.xlu0 0
    %180 = vperm.xlu0 %179, %v173
    %v181 = vpop.permute.xlu0 %180
    %v182 = vlaneseq
    %v183 = vshrl.u32 %v182, 7
    %v184 = vsub.s32 %v141, %v183
    %v185 = vrot.slane %v178, %v184
    %v186 = vlaneseq
    %v187 = vshrl.u32 %v186, 7
    %v188 = vsub.s32 %v141, %v187
    %v189 = vrot.slane %v181, %v188
    %v190 = vsel %vm150, %v189, %v185
    %v192 = vsel %vm153, %v190, 0.0
    %193 = vadd.xlane.f32.xlu0 %v192
    %v194 = vpop.xlane.xlu0 %193
    %v196 = vlaneseq
    %v197 = vshrl.u32 %v196, 7
    %v198 = vsub.s32 0, %v197
    %v199 = vrot.slane %v194, %v198
    %v200 = vlaneseq
    %v201 = vshrl.u32 %v200, 7
    %v202 = vsub.s32 1, %v201
    %v203 = vrot.slane %v194, %v202
    %v206 = vrcp.pop %v199
    %v207 = vmul.f32 %v171, %v206
    %v208 = vrcp.pop %v203
    %v209 = vmul.f32 %v173, %v208
    %211 = vset.pattern.permute.xlu0 0
    %212 = vperm.xlu0 %211, %v207
    %v213 = vpop.permute.xlu0 %212
    %216 = vset.pattern.permute.xlu0 0
    %217 = vperm.xlu0 %216, %v209
    %v218 = vpop.permute.xlu0 %217
    %v220 = vmul.f32 %v213, %v50
    %v221 = vmul.f32 %v218, %v51
    %v222 = vsel %vm76, %v220, 0.0
    %v223 = vrot.slane %v222, 4
    %v224 = vadd.f32 %v222, %v223
    %v225 = vrot.slane %v224, 2
    %v226 = vadd.f32 %v224, %v225
    %v227 = vrot.slane %v226, 1
    %v228 = vadd.f32 %v226, %v227
    %v229 = vsel %vm76, %v221, 0.0
    %v230 = vrot.slane %v229, 4
    %v231 = vadd.f32 %v229, %v230
    %v232 = vrot.slane %v231, 2
    %v233 = vadd.f32 %v231, %v232
    %v234 = vrot.slane %v233, 1
    %v235 = vadd.f32 %v233, %v234
    %v238 = vsel %vm150, %v235, %v228
    %vm240 = vcmask 254976
    %241 = vst.msk [vmem:[#allocation7] sm:$0x3] %vm240, %v238
    %v242 = vlaneseq
    %v243 = vshrl.u32 %v242, 7
    %v244 = vsub.s32 %v141, %v243
    %v245 = vrot.slane %v213, %v244
    %v246 = vlaneseq
    %v247 = vshrl.u32 %v246, 7
    %v248 = vsub.s32 %v141, %v247
    %v249 = vrot.slane %v218, %v248
    %v250 = vsel %vm150, %v249, %v245
    %252 = vst.msk [vmem:[#allocation8] sm:$0x3] %vm153, %v250
    // Predicated region
    $region26: #{tpu_custom_call.1} parent=1 // pred_check
      _
    $region27: #{tpu_custom_call.1} parent=1 // pred_check_branch
      %254 = sbr.rel (0) target = $region29
    $region28: #{tpu_custom_call.1} parent=1 // pred_region
      %s256 = ssub.s32 32, 32
      %257 = vsyncadd [#allocation4], %s256
      %s259 = sshll.u32 [#allocation7], 4
      %s260 = int_to_ptr.vmem [resolvable:$true] %s259
      %262 = dma.vmem_to_hbm [thread:$0]  %s260, 32, %s4, [#allocation4]
    $region29: #{tpu_custom_call.1} parent=1 // pred_fallthru
      _
    // Predicated region
    $region30: #{tpu_custom_call.1} parent=1 // pred_check
      _
    $region31: #{tpu_custom_call.1} parent=1 // pred_check_branch
      %264 = sbr.rel (0) target = $region33
    $region32: #{tpu_custom_call.1} parent=1 // pred_region
      %s266 = ssub.s32 32, 32
      %267 = vsyncadd [#allocation9], %s266
      %s269 = sshll.u32 [#allocation8], 4
      %s270 = int_to_ptr.vmem [resolvable:$true] %s269
      %272 = dma.vmem_to_hbm [thread:$0]  %s270, 32, %s5, [#allocation9]
    $region33: #{tpu_custom_call.1} parent=1 // pred_fallthru
      _
    // Predicated region
    $region34: #{tpu_custom_call.1} parent=1 // pred_check
      _
    $region35: #{tpu_custom_call.1} parent=1 // pred_check_branch
      %274 = sbr.rel (0) target = $region37
    $region36: #{tpu_custom_call.1} parent=1 // pred_region
      %275 = dma.done [#allocation4], 32
    $region37: #{tpu_custom_call.1} parent=1 // pred_fallthru
      _
    // Predicated region
    $region38: #{tpu_custom_call.1} parent=1 // pred_check
      _
    $region39: #{tpu_custom_call.1} parent=1 // pred_check_branch
      %277 = sbr.rel (0) target = $region41
    $region40: #{tpu_custom_call.1} parent=1 // pred_region
      %278 = dma.done [#allocation9], 32
    $region41: #{tpu_custom_call.1} parent=1 // pred_fallthru
      _
    %279 = vsyncpa [#allocation3], 1
    %280 = vsyncpa [#allocation6], 1
    %281 = vsyncpa [#allocation4], 1
    %282 = vsyncpa [#allocation9], 1

</llo_original>
